<compile_context>
chip_gen: v6e
topology: v6e:2x2x1
jax: 0.10.0
libtpu: 0.0.40
codegen_flags: <defaults>
</compile_context>

<pallas_src>
import math

import jax
import jax.numpy as jnp
from jax import lax
from jax.experimental import pallas as pl
from jax.experimental.pallas import tpu as pltpu

_LANES = 128
_TARGET_BLOCK_BYTES = 2 * 1024 * 1024      # ~2 MiB per input block
_MIN_KERNEL_ELEMENTS = 1 << 16             # below this, XLA fusion wins
_MAX_MIN_BLOCK_BYTES = 8 * 1024 * 1024     # give up on Pallas for pathological D
_VMEM_LIMIT_BYTES = 40 * 1024 * 1024       # < 64 MiB physical on v7x


def _round_up(x: int, m: int) -> int:
    return ((x + m - 1) // m) * m


def _closed_form(mu, sigma, target):
    """Plain-JAX path (tiny inputs / pathological fallback)."""
    mu = mu.astype(jnp.float32)
    sigma = sigma.astype(jnp.float32)
    target = target.astype(jnp.float32)
    b, d = mu.shape
    diff = target - mu
    total = jnp.sum(diff * diff / sigma + jnp.log(sigma))
    const = jnp.float32(b * d) * jnp.float32(math.log(2.0 * math.pi))
    return jnp.float32(0.5) * (total + const) / jnp.float32(b)


def _make_partial_kernel(tile_rows: int, lanes: int, limit: int, mask_mode):
    """Per-tile elementwise NLL contribution reduced to an (8, lanes) partial.

    mask_mode: None (block divides array exactly), "flat" (mask by flat
    element index < limit), or "rows" (mask by row index < limit).
    """

    def kernel(mu_ref, sigma_ref, tgt_ref, out_ref):
        mu = mu_ref[...].astype(jnp.float32)
        sigma = sigma_ref[...].astype(jnp.float32)
        tgt = tgt_ref[...].astype(jnp.float32)

        diff = tgt - mu
        contrib = diff * diff / sigma + jnp.log(sigma)  # (tile_rows, lanes)

        if mask_mode is not None:
            row0 = pl.program_id(0) * tile_rows
            row_idx = row0 + lax.broadcasted_iota(jnp.int32, (tile_rows, lanes), 0)
            if mask_mode == "flat":
                lane_idx = lax.broadcasted_iota(jnp.int32, (tile_rows, lanes), 1)
                valid = row_idx * lanes + lane_idx < limit
            else:  # "rows"
                valid = row_idx < limit
            # Select (not multiply): garbage sigma in the overhang can produce
            # NaN/Inf which a select safely discards.
            contrib = jnp.where(valid, contrib, 0.0)

        # Sublane-group reduce -> (8, lanes) lane-dense partial; no cross-lane
        # XLU reduce, unmasked output store.
        out_ref[...] = jnp.sum(contrib.reshape(tile_rows // 8, 8, lanes), axis=0)

    return kernel


def _launch_partials(mu2, sg2, tg2, *, tile_rows, lanes, limit, mask_mode, n_total):
    rows = mu2.shape[0]
    num_tiles = pl.cdiv(rows, tile_rows)

    bytes_in = n_total * sum(jnp.dtype(a.dtype).itemsize for a in (mu2, sg2, tg2))
    cost = pl.CostEstimate(
        flops=6 * n_total,
        transcendentals=2 * n_total,  # log + the f32 divide's reciprocal
        bytes_accessed=bytes_in + num_tiles * 8 * lanes * 4,
    )

    kernel = _make_partial_kernel(tile_rows, lanes, limit, mask_mode)

    return pl.pallas_call(
        kernel,
        out_shape=jax.ShapeDtypeStruct((num_tiles * 8, lanes), jnp.float32),
        grid_spec=pltpu.PrefetchScalarGridSpec(
            num_scalar_prefetch=0,
            grid=(num_tiles,),
            in_specs=[
                pl.BlockSpec((tile_rows, lanes), lambda i: (i, 0)),
                pl.BlockSpec((tile_rows, lanes), lambda i: (i, 0)),
                pl.BlockSpec((tile_rows, lanes), lambda i: (i, 0)),
            ],
            out_specs=pl.BlockSpec((8, lanes), lambda i: (i, 0)),
        ),
        compiler_params=pltpu.CompilerParams(
            dimension_semantics=("parallel",),
            vmem_limit_bytes=_VMEM_LIMIT_BYTES,
        ),
        cost_estimate=cost,
    )(mu2, sg2, tg2)


def criterion(mu: jax.Array, sigma: jax.Array, target: jax.Array) -> jax.Array:
    """Mean NLL of a diag-covariance MVN over the batch. Returns a scalar f32."""
    assert mu.shape == sigma.shape == target.shape and mu.ndim == 2
    b, d = mu.shape
    n = b * d

    # Tiny-input fast path: kernel launch + wrapper reshapes dominate here.
    if n < _MIN_KERNEL_ELEMENTS:
        return _closed_form(mu, sigma, target)

    itemsize = max(jnp.dtype(a.dtype).itemsize for a in (mu, sigma, target))

    if d % _LANES == 0:
        # Lane-dense flat view; reshape is layout-free since D % 128 == 0.
        rows = n // _LANES
        mu2 = mu.reshape(rows, _LANES)
        sg2 = sigma.reshape(rows, _LANES)
        tg2 = target.reshape(rows, _LANES)
        lanes = _LANES
        max_rows = max(8, (_TARGET_BLOCK_BYTES // (_LANES * itemsize)) // 8 * 8)
        limit = n
        ragged_mask_mode = "flat"
    else:
        # Awkward D: tile (B, D) directly (block last dim == full D), no pad.
        per_row_bytes = d * itemsize
        if 8 * per_row_bytes > _MAX_MIN_BLOCK_BYTES:
            # TODO(synk): pathological huge non-128-multiple D; plain XLA fallback.
            return _closed_form(mu, sigma, target)
        rows = b
        mu2, sg2, tg2 = mu, sigma, target
        lanes = d
        max_rows = max(8, (_TARGET_BLOCK_BYTES // per_row_bytes) // 8 * 8)
        limit = b
        ragged_mask_mode = "rows"

    # Keep >= 2 grid steps when possible so v7x's two TensorCores both work.
    half_rows = _round_up(pl.cdiv(rows, 2), 8)
    tile_rows = max(8, min(max_rows, half_rows))
    num_tiles = pl.cdiv(rows, tile_rows)
    mask_mode = ragged_mask_mode if (rows % tile_rows != 0) else None

    partials = _launch_partials(
        mu2, sg2, tg2,
        tile_rows=tile_rows, lanes=lanes, limit=limit,
        mask_mode=mask_mode, n_total=n,
    )

    # Cheap scalar epilogue in the wrapper.
    total = jnp.sum(partials)
    const = jnp.float32(n) * jnp.float32(math.log(2.0 * math.pi))
    return jnp.float32(0.5) * (total + const) / jnp.float32(b)


def _reference(mu, sigma, target):
    # Pure-JAX reference of the PyTorch per-batch loop.
    diff = target - mu
    logdet = jnp.sum(jnp.log(sigma), axis=-1)
    quad = jnp.sum(diff * diff / sigma, axis=-1)
    d = mu.shape[-1]
    log_prob = -0.5 * (d * jnp.log(2.0 * jnp.pi) + logdet + quad)
    return -jnp.mean(log_prob)


if __name__ == "__main__":
    key = jax.random.PRNGKey(0)

    def make_inputs(k, b, d):
        k_mu, k_sig, k_tgt = jax.random.split(k, 3)
        mu = jax.random.normal(k_mu, (b, d), dtype=jnp.float32)
        # covariance diagonal must be positive
        sigma = jnp.exp(0.3 * jax.random.normal(k_sig, (b, d), dtype=jnp.float32)) + 0.1
        tgt = jax.random.normal(k_tgt, (b, d), dtype=jnp.float32)
        return mu, sigma, tgt

    cases = [
        (8, 32),      # tiny-input fast path (plain XLA)
        (257, 512),   # flat (rows,128) kernel path, ragged last tile (masked)
        (250, 500),   # (B, D) kernel path (D % 128 != 0), ragged last tile
    ]
    keys = jax.random.split(key, len(cases))
    for (bb, dd), k in zip(cases, keys):
        mu, sigma, target = make_inputs(k, bb, dd)
        loss = criterion(mu, sigma, target)
        jax.block_until_ready(loss)
        ref = _reference(mu, sigma, target)
        assert jnp.allclose(loss, ref, rtol=1e-4, atol=1e-4), (bb, dd, loss, ref)

    print("KERNEL_OK")
</pallas_src>

<mosaic_0001>
module attributes {stable_mosaic.version = 11 : i64} {
  func.func @kernel(%arg0: i32, %arg1: memref<520x128xf32, #tpu.memory_space<vmem>>, %arg2: memref<520x128xf32, #tpu.memory_space<vmem>>, %arg3: memref<520x128xf32, #tpu.memory_space<vmem>>, %arg4: memref<8x128xf32, #tpu.memory_space<vmem>>) attributes {dimension_semantics = [#tpu.dimension_semantics<parallel>], iteration_bounds = array<i64: 2>, scalar_prefetch = 0 : i64, scratch_operands = 0 : i64, tpu.core_type = #tpu.core_type<tc>, window_params = [{transform_indices = @transform_0, window_bounds = array<i64: 520, 128>}, {transform_indices = @transform_1, window_bounds = array<i64: 520, 128>}, {transform_indices = @transform_2, window_bounds = array<i64: 520, 128>}, {transform_indices = @transform_3, window_bounds = array<i64: 8, 128>}]} {
    %c0 = arith.constant 0 : index
    %c0_0 = arith.constant 0 : index
    %0 = vector.load %arg1[%c0, %c0_0] : memref<520x128xf32, #tpu.memory_space<vmem>>, vector<520x128xf32>
    %c0_1 = arith.constant 0 : index
    %c0_2 = arith.constant 0 : index
    %1 = vector.load %arg2[%c0_1, %c0_2] : memref<520x128xf32, #tpu.memory_space<vmem>>, vector<520x128xf32>
    %c0_3 = arith.constant 0 : index
    %c0_4 = arith.constant 0 : index
    %2 = vector.load %arg3[%c0_3, %c0_4] : memref<520x128xf32, #tpu.memory_space<vmem>>, vector<520x128xf32>
    %3 = arith.subf %2, %0 : vector<520x128xf32>
    %4 = arith.mulf %3, %3 : vector<520x128xf32>
    %5 = arith.divf %4, %1 : vector<520x128xf32>
    %6 = math.log %1 : vector<520x128xf32>
    %7 = arith.addf %5, %6 : vector<520x128xf32>
    %c520_i32 = arith.constant 520 : i32
    %8 = arith.muli %arg0, %c520_i32 : i32
    %9 = tpu.iota {dimensions = array<i32: 0>} : vector<520x128xi32>
    %10 = vector.broadcast %8 : i32 to vector<520x128xi32>
    %11 = arith.addi %10, %9 : vector<520x128xi32>
    %12 = tpu.iota {dimensions = array<i32: 1>} : vector<520x128xi32>
    %c128_i32 = arith.constant 128 : i32
    %13 = vector.broadcast %c128_i32 : i32 to vector<520x128xi32>
    %14 = arith.muli %11, %13 : vector<520x128xi32>
    %15 = arith.addi %14, %12 : vector<520x128xi32>
    %c131584_i32 = arith.constant 131584 : i32
    %16 = vector.broadcast %c131584_i32 : i32 to vector<520x128xi32>
    %17 = arith.cmpi slt, %15, %16 : vector<520x128xi32>
    %cst = arith.constant 0.000000e+00 : f32
    %18 = vector.broadcast %cst : f32 to vector<520x128xf32>
    %19 = arith.select %17, %7, %18 : vector<520x128xi1>, vector<520x128xf32>
    %20 = vector.shape_cast %19 : vector<520x128xf32> to vector<65x8x128xf32>
    %cst_5 = arith.constant dense<0.000000e+00> : vector<8x128xf32>
    %21 = vector.multi_reduction <add>, %20, %cst_5 [0] : vector<65x8x128xf32> to vector<8x128xf32>
    %c0_6 = arith.constant 0 : index
    %c0_7 = arith.constant 0 : index
    %22 = vector.load %arg4[%c0_6, %c0_7] : memref<8x128xf32, #tpu.memory_space<vmem>>, vector<8x128xf32>
    tpu.vector_store %arg4[%c0_6, %c0_7], %21 {strides = array<i32>} : memref<8x128xf32, #tpu.memory_space<vmem>>, vector<8x128xf32>,
    return
  }
  func.func @transform_0(%arg0: i32) -> (i32, i32) {
    %c0_i32 = arith.constant 0 : i32
    %c0_i32_0 = arith.constant 0 : i32
    return %arg0, %c0_i32 : i32, i32
  }
  func.func @transform_1(%arg0: i32) -> (i32, i32) {
    %c0_i32 = arith.constant 0 : i32
    %c0_i32_0 = arith.constant 0 : i32
    return %arg0, %c0_i32 : i32, i32
  }
  func.func @transform_2(%arg0: i32) -> (i32, i32) {
    %c0_i32 = arith.constant 0 : i32
    %c0_i32_0 = arith.constant 0 : i32
    return %arg0, %c0_i32 : i32, i32
  }
  func.func @transform_3(%arg0: i32) -> (i32, i32) {
    %c0_i32 = arith.constant 0 : i32
    %c0_i32_0 = arith.constant 0 : i32
    return %arg0, %c0_i32 : i32, i32
  }
}

</mosaic_0001>

<llo_original>
// kernel: tpu_custom_call.1
$region0: #{tpu_custom_call.1}
  #allocation0 [shape = 'u32[]', space=smem, size = 0x4, offset = 0x4, fixed_abs, tag = 'smem constant byte address 0x4 - core index']
  #allocation1 [shape = 'u32[144,128]{1,0:T(1,128)}', space=vmem, size = 0x12000, scoped, tag = 'internal scratch']
  %s0 = inlined_call_operand.hbm [shape: f32[1028,128], index: 0, kind: input, shape index: {}]
  %s1 = inlined_call_operand.hbm [shape: f32[1028,128], index: 1, kind: input, shape index: {}]
  %s2 = inlined_call_operand.hbm [shape: f32[1028,128], index: 2, kind: input, shape index: {}]
  %s3 = inlined_call_operand.hbm [shape: f32[16,128], index: 3, kind: output, shape index: {}]
  %s4 = sld [smem:[#allocation0]]
  $region57: #{tpu_custom_call.1} parent=0
    _
  %s6 = ssub.s32 1, %s4
  %s7 = scalar_select 0, %s6, %s4
  $region1: #{tpu_custom_call.1} parent=0
    #allocation2 [shape = 'u8[532480]{0}', space=vmem, size = 0x82000, scoped, tag = 'input window, operand 0']
    #allocation3 [shape = 's32[2]{0}', space=sflag, size = 0x8, scoped, tag = 'scoped memory for tpu_custom_call.1']
    #allocation4 [shape = 's32[2]{0}', space=sflag, size = 0x8, scoped, tag = 'scoped memory for tpu_custom_call.1']
    #allocation5 [shape = 'u8[532480]{0}', space=vmem, size = 0x82000, scoped, tag = 'input window, operand 1']
    #allocation6 [shape = 's32[2]{0}', space=sflag, size = 0x8, scoped, tag = 'scoped memory for tpu_custom_call.1']
    #allocation7 [shape = 'u8[532480]{0}', space=vmem, size = 0x82000, scoped, tag = 'input window, operand 2']
    #allocation8 [shape = 'u8[8192]{0}', space=vmem, size = 0x2000, scoped, tag = 'output window, operand 0']
    %8 = vsyncpa [#allocation3], 0
    %s9 = scalar_lea.sflag [#allocation3], 1
    %10 = vsyncpa %s9, 0
    %11 = vsyncpa [#allocation6], 0
    %s12 = scalar_lea.sflag [#allocation6], 1
    %13 = vsyncpa %s12, 0
    %14 = vsyncpa [#allocation4], 0
    %s15 = scalar_lea.sflag [#allocation4], 1
    %16 = vsyncpa %s15, 0
    loop: start=0, step=1, limit=4
    $region2: #{tpu_custom_call.1} parent=1 // loop_pre_header
      _
    $region3: #{tpu_custom_call.1} parent=1 // loop_header
      %s18 = sphi 0, %s22
      %p19 = scmp.ge.s32.totalorder %s18, 4
      %s28 = sphi 0, %s30
      %s31 = sphi 0, %s28
      %s32 = sphi 0, %s31
      %s48 = sphi 0, %s32
      %s54 = sphi 0, %s56
      %s57 = sphi 0, %s54
      %s58 = sphi 0, %s57
      %s74 = sphi 0, %s58
      %s80 = sphi 0, %s82
      %s83 = sphi 0, %s80
      %s84 = sphi 0, %s83
      %s100 = sphi 0, %s84
      %s106 = sphi 0, %s108
      %s109 = sphi 0, %s106
      %s110 = sphi 0, %s109
      %s126 = sphi 0, %s110
    $region4: #{tpu_custom_call.1} parent=1 // loop_header_branch
      %21 = sbr.rel (%p19) target = $region8
    $region5: #{tpu_custom_call.1} parent=1 // loop_body
      %s23 = ssub.s32 %s18, 1
      %s24 = ssub.s32 %s18, 2
      %s25 = sadd.s32 %s18, 1
      %s26 = ssub.s32 %s18, %s25
      %p27 = scmp.eq.s32.totalorder %s26, 0
      %s29 = sadd.s32 %s28, 1
      %s30 = scalar_select %p27, %s28, %s29
      %p33 = pneg %p27
      %p34 = scmp.eq.s32.totalorder %s18, 1
      %p35 = por %p33, %p34
      %p36 = scmp.ne.s32.totalorder %s28, %s31
      %p37 = scmp.eq.s32.totalorder %s18, 0
      %p38 = por %p36, %p37
      %p39 = scmp.ne.s32.totalorder %s28, %s31
      %p40 = scmp.eq.s32.totalorder %s23, 1
      %p41 = por %p39, %p40
      %p42 = scmp.ne.s32.totalorder %s31, %s32
      %p43 = scmp.eq.s32.totalorder %s23, 0
      %p44 = por %p42, %p43
      %p45 = scmp.ne.s32.totalorder %s31, %s32
      %p46 = scmp.eq.s32.totalorder %s24, 1
      %p47 = por %p45, %p46
      %p49 = scmp.ne.s32.totalorder %s32, %s48
      %p50 = scmp.eq.s32.totalorder %s24, 0
      %p51 = por %p49, %p50
      %s52 = ssub.s32 %s18, %s25
      %p53 = scmp.eq.s32.totalorder %s52, 0
      %s55 = sadd.s32 %s54, 1
      %s56 = scalar_select %p53, %s54, %s55
      %p59 = pneg %p53
      %p60 = scmp.eq.s32.totalorder %s18, 1
      %p61 = por %p59, %p60
      %p62 = scmp.ne.s32.totalorder %s54, %s57
      %p63 = scmp.eq.s32.totalorder %s18, 0
      %p64 = por %p62, %p63
      %p65 = scmp.ne.s32.totalorder %s54, %s57
      %p66 = scmp.eq.s32.totalorder %s23, 1
      %p67 = por %p65, %p66
      %p68 = scmp.ne.s32.totalorder %s57, %s58
      %p69 = scmp.eq.s32.totalorder %s23, 0
      %p70 = por %p68, %p69
      %p71 = scmp.ne.s32.totalorder %s57, %s58
      %p72 = scmp.eq.s32.totalorder %s24, 1
      %p73 = por %p71, %p72
      %p75 = scmp.ne.s32.totalorder %s58, %s74
      %p76 = scmp.eq.s32.totalorder %s24, 0
      %p77 = por %p75, %p76
      %s78 = ssub.s32 %s18, %s25
      %p79 = scmp.eq.s32.totalorder %s78, 0
      %s81 = sadd.s32 %s80, 1
      %s82 = scalar_select %p79, %s80, %s81
      %p85 = pneg %p79
      %p86 = scmp.eq.s32.totalorder %s18, 1
      %p87 = por %p85, %p86
      %p88 = scmp.ne.s32.totalorder %s80, %s83
      %p89 = scmp.eq.s32.totalorder %s18, 0
      %p90 = por %p88, %p89
      %p91 = scmp.ne.s32.totalorder %s80, %s83
      %p92 = scmp.eq.s32.totalorder %s23, 1
      %p93 = por %p91, %p92
      %p94 = scmp.ne.s32.totalorder %s83, %s84
      %p95 = scmp.eq.s32.totalorder %s23, 0
      %p96 = por %p94, %p95
      %p97 = scmp.ne.s32.totalorder %s83, %s84
      %p98 = scmp.eq.s32.totalorder %s24, 1
      %p99 = por %p97, %p98
      %p101 = scmp.ne.s32.totalorder %s84, %s100
      %p102 = scmp.eq.s32.totalorder %s24, 0
      %p103 = por %p101, %p102
      %s104 = ssub.s32 %s18, %s25
      %p105 = scmp.eq.s32.totalorder %s104, 0
      %s107 = sadd.s32 %s106, 1
      %s108 = scalar_select %p105, %s106, %s107
      %p111 = pneg %p105
      %p112 = scmp.eq.s32.totalorder %s18, 1
      %p113 = por %p111, %p112
      %p114 = scmp.ne.s32.totalorder %s106, %s109
      %p115 = scmp.eq.s32.totalorder %s18, 0
      %p116 = por %p114, %p115
      %p117 = scmp.ne.s32.totalorder %s106, %s109
      %p118 = scmp.eq.s32.totalorder %s23, 1
      %p119 = por %p117, %p118
      %p120 = scmp.ne.s32.totalorder %s109, %s110
      %p121 = scmp.eq.s32.totalorder %s23, 0
      %p122 = por %p120, %p121
      %p123 = scmp.ne.s32.totalorder %s109, %s110
      %p124 = scmp.eq.s32.totalorder %s24, 1
      %p125 = por %p123, %p124
      %p127 = scmp.ne.s32.totalorder %s110, %s126
      %p128 = scmp.eq.s32.totalorder %s24, 0
      %p129 = por %p127, %p128
      %p130 = scmp.le.s32.totalorder 1, %s18
      %p131 = scmp.lt.s32.totalorder %s18, 3
      %p132 = pnand %p130, %p131
      %p133 = pneg %p132
      // Predicated region
      $region9: #{tpu_custom_call.1} parent=5 // pred_check
        _
      $region10: #{tpu_custom_call.1} parent=5 // pred_check_branch
        %135 = sbr.rel (%p132) target = $region12
      $region11: #{tpu_custom_call.1} parent=5 // pred_region
        %s136 = ssub.s32 %s18, 1
      $region12: #{tpu_custom_call.1} parent=5 // pred_fallthru
        _
      %p137 = scmp.lt.s32.totalorder %s18, 2
      // Predicated region
      $region13: #{tpu_custom_call.1} parent=5 // pred_check
        %p138 = pneg %p137
      $region14: #{tpu_custom_call.1} parent=5 // pred_check_branch
        %140 = sbr.rel (%p138) target = $region16
      $region15: #{tpu_custom_call.1} parent=5 // pred_region
        // Predicated region
        $region17: #{tpu_custom_call.1} parent=15 // pred_check
          %p141 = pneg %p38
        $region18: #{tpu_custom_call.1} parent=15 // pred_check_branch
          %143 = sbr.rel (%p141) target = $region20
        $region19: #{tpu_custom_call.1} parent=15 // pred_region
          %s144 = sand.u32 %s28, 1
          %s145 = scalar_lea.sflag [#allocation3], %s144
          %s146 = sand.u32 %s28, 1
          %s147 = smul.addr %s146, 520
          %s148 = scalar_lea.vmem [#allocation2], %s147
          %s149 = smul.u32 65, %s18
          %s150 = ssub.s32 129, %s149
          %p151 = scmp.lt.s32.totalorder %s150, 65
          %s152 = scalar_select %p151, %s150, 65
          %s153 = smul.u32 128, %s152
          %s155 = ssub.s32 8320, %s153
          %156 = vsyncadd %s145, %s155
          %p157 = scmp.ne.s32.totalorder 0, %s153
          %s158 = smul.addr %s149, 128
          %s159 = scalar_lea.hbm %s0, %s158
          %s160 = smul.u32 8, %s152
          %s161 = sshll.u32 %s148, 4
          %s162 = int_to_ptr.vmem [resolvable:$true] %s161
          %s163 = sshll.u32 %s160, 4
          %167 = dma.hbm_to_vmem [thread:$0]  (%p157), %s159, %s163, %s162, %s145, 128, 128, 8
        $region20: #{tpu_custom_call.1} parent=15 // pred_fallthru
          _
        // Predicated region
        $region21: #{tpu_custom_call.1} parent=15 // pred_check
          %p168 = pneg %p64
        $region22: #{tpu_custom_call.1} parent=15 // pred_check_branch
          %170 = sbr.rel (%p168) target = $region24
        $region23: #{tpu_custom_call.1} parent=15 // pred_region
          %s171 = sand.u32 %s18, 1
          %s172 = scalar_lea.sflag [#allocation6], %s171
          %s173 = sand.u32 %s54, 1
          %s174 = smul.addr %s173, 520
          %s175 = scalar_lea.vmem [#allocation5], %s174
          %s176 = smul.u32 65, %s18
          %s177 = ssub.s32 129, %s176
          %p178 = scmp.lt.s32.totalorder %s177, 65
          %s179 = scalar_select %p178, %s177, 65
          %s180 = smul.u32 128, %s179
          %s182 = ssub.s32 8320, %s180
          %183 = vsyncadd %s172, %s182
          %p184 = scmp.ne.s32.totalorder 0, %s180
          %s185 = smul.addr %s176, 128
          %s186 = scalar_lea.hbm %s1, %s185
          %s187 = smul.u32 8, %s179
          %s188 = sshll.u32 %s175, 4
          %s189 = int_to_ptr.vmem [resolvable:$true] %s188
          %s190 = sshll.u32 %s187, 4
          %194 = dma.hbm_to_vmem [thread:$0]  (%p184), %s186, %s190, %s189, %s172, 128, 128, 8
        $region24: #{tpu_custom_call.1} parent=15 // pred_fallthru
          _
        // Predicated region
        $region25: #{tpu_custom_call.1} parent=15 // pred_check
          %p195 = pneg %p90
        $region26: #{tpu_custom_call.1} parent=15 // pred_check_branch
          %197 = sbr.rel (%p195) target = $region28
        $region27: #{tpu_custom_call.1} parent=15 // pred_region
          %s198 = sand.u32 %s18, 1
          %s199 = scalar_lea.sflag [#allocation6], %s198
          %s200 = sand.u32 %s80, 1
          %s201 = smul.addr %s200, 520
          %s202 = scalar_lea.vmem [#allocation7], %s201
          %s203 = smul.u32 65, %s18
          %s204 = ssub.s32 129, %s203
          %p205 = scmp.lt.s32.totalorder %s204, 65
          %s206 = scalar_select %p205, %s204, 65
          %s207 = smul.u32 128, %s206
          %s209 = ssub.s32 8320, %s207
          %210 = vsyncadd %s199, %s209
          %p211 = scmp.ne.s32.totalorder 0, %s207
          %s212 = smul.addr %s203, 128
          %s213 = scalar_lea.hbm %s2, %s212
          %s214 = smul.u32 8, %s206
          %s215 = sshll.u32 %s202, 4
          %s216 = int_to_ptr.vmem [resolvable:$true] %s215
          %s217 = sshll.u32 %s214, 4
          %221 = dma.hbm_to_vmem [thread:$0]  (%p211), %s213, %s217, %s216, %s199, 128, 128, 8
        $region28: #{tpu_custom_call.1} parent=15 // pred_fallthru
          _
      $region16: #{tpu_custom_call.1} parent=5 // pred_fallthru
        _
      %p222 = scmp.le.s32.totalorder 1, %s18
      %p223 = scmp.lt.s32.totalorder %s18, 3
      %p224 = pnand %p222, %p223
      %p225 = pneg %p224
      // Predicated region
      $region29: #{tpu_custom_call.1} parent=5 // pred_check
        _
      $region30: #{tpu_custom_call.1} parent=5 // pred_check_branch
        %227 = sbr.rel (%p224) target = $region32
      $region31: #{tpu_custom_call.1} parent=5 // pred_region
        %s228 = ssub.s32 %s18, 1
        %s229 = sand.u32 %s31, 1
        %s230 = scalar_lea.sflag [#allocation3], %s229
        %s231 = sand.u32 %s31, 1
        %s232 = smul.addr %s231, 520
        %s233 = scalar_lea.vmem [#allocation2], %s232
        // Predicated region
        $region33: #{tpu_custom_call.1} parent=31 // pred_check
          %p234 = pneg %p44
        $region34: #{tpu_custom_call.1} parent=31 // pred_check_branch
          %236 = sbr.rel (%p234) target = $region36
        $region35: #{tpu_custom_call.1} parent=31 // pred_region
          %237 = dma.done %s230, 8320
        $region36: #{tpu_custom_call.1} parent=31 // pred_fallthru
          _
        %s238 = sand.u32 %s23, 1
        %s239 = scalar_lea.sflag [#allocation6], %s238
        %s240 = sand.u32 %s57, 1
        %s241 = smul.addr %s240, 520
        %s242 = scalar_lea.vmem [#allocation5], %s241
        // Predicated region
        $region37: #{tpu_custom_call.1} parent=31 // pred_check
          %p243 = pneg %p70
        $region38: #{tpu_custom_call.1} parent=31 // pred_check_branch
          %245 = sbr.rel (%p243) target = $region40
        $region39: #{tpu_custom_call.1} parent=31 // pred_region
          %246 = dma.done %s239, 8320
        $region40: #{tpu_custom_call.1} parent=31 // pred_fallthru
          _
        %s247 = sand.u32 %s23, 1
        %s248 = scalar_lea.sflag [#allocation6], %s247
        %s249 = sand.u32 %s83, 1
        %s250 = smul.addr %s249, 520
        %s251 = scalar_lea.vmem [#allocation7], %s250
        // Predicated region
        $region41: #{tpu_custom_call.1} parent=31 // pred_check
          %p252 = pneg %p96
        $region42: #{tpu_custom_call.1} parent=31 // pred_check_branch
          %254 = sbr.rel (%p252) target = $region44
        $region43: #{tpu_custom_call.1} parent=31 // pred_region
          %255 = dma.done %s248, 8320
        $region44: #{tpu_custom_call.1} parent=31 // pred_fallthru
          _
        %s256 = sand.u32 %s31, 1
        %s257 = scalar_lea.sflag [#allocation3], %s256
        %s258 = sand.u32 %s31, 1
        %s259 = smul.addr %s258, 520
        %s260 = scalar_lea.vmem [#allocation2], %s259
        %p261 = pneg %p44
        %p262 = pneg %p41
        %s263 = sand.u32 %s23, 1
        %s264 = scalar_lea.sflag [#allocation6], %s263
        %s265 = sand.u32 %s57, 1
        %s266 = smul.addr %s265, 520
        %s267 = scalar_lea.vmem [#allocation5], %s266
        %p268 = pneg %p70
        %p269 = pneg %p67
        %s270 = sand.u32 %s23, 1
        %s271 = scalar_lea.sflag [#allocation6], %s270
        %s272 = sand.u32 %s83, 1
        %s273 = smul.addr %s272, 520
        %s274 = scalar_lea.vmem [#allocation7], %s273
        %p275 = pneg %p96
        %p276 = pneg %p93
        %p277 = pneg %p122
        %p278 = pneg %p119
        %s279 = sand.u32 %s109, 1
        %s280 = scalar_lea.sflag [#allocation4], %s279
        %s281 = sand.u32 %s109, 1
        %s282 = smul.addr %s281, 8
        %s283 = scalar_lea.vmem [#allocation8], %s282
        %s284 = smul.u32 65, %s23
        %s285 = ssub.s32 129, %s284
        %p286 = scmp.lt.s32.totalorder %s285, 65
        %s287 = scalar_select %p286, %s285, 65
        %s288 = smul.u32 128, %s287
        %s289 = smul.u32 65, %s23
        %s290 = ssub.s32 129, %s289
        %p291 = scmp.lt.s32.totalorder %s290, 65
        %s292 = scalar_select %p291, %s290, 65
        %s293 = smul.u32 128, %s292
        %s294 = smul.u32 65, %s23
        %s295 = ssub.s32 129, %s294
        %p296 = scmp.lt.s32.totalorder %s295, 65
        %s297 = scalar_select %p296, %s295, 65
        %s298 = smul.u32 128, %s297
        %v299 = vld [vmem:[%s233] sm:$0xff]
        %v300 = vld [vmem:[%s233 + $0x8] sm:$0xff]
        %v301 = vld [vmem:[%s233 + $0x10] sm:$0xff]
        %v302 = vld [vmem:[%s233 + $0x18] sm:$0xff]
        %v303 = vld [vmem:[%s233 + $0x20] sm:$0xff]
        %v304 = vld [vmem:[%s233 + $0x28] sm:$0xff]
        %v305 = vld [vmem:[%s233 + $0x30] sm:$0xff]
        %v306 = vld [vmem:[%s233 + $0x38] sm:$0xff]
        %v307 = vld [vmem:[%s233 + $0x40] sm:$0xff]
        %v308 = vld [vmem:[%s233 + $0x48] sm:$0xff]
        %v309 = vld [vmem:[%s233 + $0x50] sm:$0xff]
        %v310 = vld [vmem:[%s233 + $0x58] sm:$0xff]
        %v311 = vld [vmem:[%s233 + $0x60] sm:$0xff]
        %v312 = vld [vmem:[%s233 + $0x68] sm:$0xff]
        %v313 = vld [vmem:[%s233 + $0x70] sm:$0xff]
        %v314 = vld [vmem:[%s233 + $0x78] sm:$0xff]
        %v315 = vld [vmem:[%s233 + $0x80] sm:$0xff]
        %v316 = vld [vmem:[%s233 + $0x88] sm:$0xff]
        %v317 = vld [vmem:[%s233 + $0x90] sm:$0xff]
        %v318 = vld [vmem:[%s233 + $0x98] sm:$0xff]
        %v319 = vld [vmem:[%s233 + $0xa0] sm:$0xff]
        %v320 = vld [vmem:[%s233 + $0xa8] sm:$0xff]
        %v321 = vld [vmem:[%s233 + $0xb0] sm:$0xff]
        %v322 = vld [vmem:[%s233 + $0xb8] sm:$0xff]
        %v323 = vld [vmem:[%s233 + $0xc0] sm:$0xff]
        %v324 = vld [vmem:[%s233 + $0xc8] sm:$0xff]
        %v325 = vld [vmem:[%s233 + $0xd0] sm:$0xff]
        %v326 = vld [vmem:[%s233 + $0xd8] sm:$0xff]
        %v327 = vld [vmem:[%s233 + $0xe0] sm:$0xff]
        %v328 = vld [vmem:[%s233 + $0xe8] sm:$0xff]
        %v329 = vld [vmem:[%s233 + $0xf0] sm:$0xff]
        %v330 = vld [vmem:[%s233 + $0xf8] sm:$0xff]
        %v331 = vld [vmem:[%s233 + $0x100] sm:$0xff]
        %v332 = vld [vmem:[%s233 + $0x108] sm:$0xff]
        %v333 = vld [vmem:[%s233 + $0x110] sm:$0xff]
        %v334 = vld [vmem:[%s233 + $0x118] sm:$0xff]
        %v335 = vld [vmem:[%s233 + $0x120] sm:$0xff]
        %v336 = vld [vmem:[%s233 + $0x128] sm:$0xff]
        %v337 = vld [vmem:[%s233 + $0x130] sm:$0xff]
        %v338 = vld [vmem:[%s233 + $0x138] sm:$0xff]
        %v339 = vld [vmem:[%s233 + $0x140] sm:$0xff]
        %v340 = vld [vmem:[%s233 + $0x148] sm:$0xff]
        %v341 = vld [vmem:[%s233 + $0x150] sm:$0xff]
        %v342 = vld [vmem:[%s233 + $0x158] sm:$0xff]
        %v343 = vld [vmem:[%s233 + $0x160] sm:$0xff]
        %v344 = vld [vmem:[%s233 + $0x168] sm:$0xff]
        %v345 = vld [vmem:[%s233 + $0x170] sm:$0xff]
        %v346 = vld [vmem:[%s233 + $0x178] sm:$0xff]
        %v347 = vld [vmem:[%s233 + $0x180] sm:$0xff]
        %v348 = vld [vmem:[%s233 + $0x188] sm:$0xff]
        %v349 = vld [vmem:[%s233 + $0x190] sm:$0xff]
        %v350 = vld [vmem:[%s233 + $0x198] sm:$0xff]
        %v351 = vld [vmem:[%s233 + $0x1a0] sm:$0xff]
        %v352 = vld [vmem:[%s233 + $0x1a8] sm:$0xff]
        %v353 = vld [vmem:[%s233 + $0x1b0] sm:$0xff]
        %v354 = vld [vmem:[%s233 + $0x1b8] sm:$0xff]
        %v355 = vld [vmem:[%s233 + $0x1c0] sm:$0xff]
        %v356 = vld [vmem:[%s233 + $0x1c8] sm:$0xff]
        %v357 = vld [vmem:[%s233 + $0x1d0] sm:$0xff]
        %v358 = vld [vmem:[%s233 + $0x1d8] sm:$0xff]
        %v359 = vld [vmem:[%s233 + $0x1e0] sm:$0xff]
        %v360 = vld [vmem:[%s233 + $0x1e8] sm:$0xff]
        %v361 = vld [vmem:[%s233 + $0x1f0] sm:$0xff]
        %v362 = vld [vmem:[%s233 + $0x1f8] sm:$0xff]
        %v363 = vld [vmem:[%s233 + $0x200] sm:$0xff]
        %v364 = vld [vmem:[%s242] sm:$0xff]
        %v365 = vld [vmem:[%s242 + $0x8] sm:$0xff]
        %v366 = vld [vmem:[%s242 + $0x10] sm:$0xff]
        %v367 = vld [vmem:[%s242 + $0x18] sm:$0xff]
        %v368 = vld [vmem:[%s242 + $0x20] sm:$0xff]
        %v369 = vld [vmem:[%s242 + $0x28] sm:$0xff]
        %v370 = vld [vmem:[%s242 + $0x30] sm:$0xff]
        %v371 = vld [vmem:[%s242 + $0x38] sm:$0xff]
        %v372 = vld [vmem:[%s242 + $0x40] sm:$0xff]
        %v373 = vld [vmem:[%s242 + $0x48] sm:$0xff]
        %v374 = vld [vmem:[%s242 + $0x50] sm:$0xff]
        %v375 = vld [vmem:[%s242 + $0x58] sm:$0xff]
        %v376 = vld [vmem:[%s242 + $0x60] sm:$0xff]
        %v377 = vld [vmem:[%s242 + $0x68] sm:$0xff]
        %v378 = vld [vmem:[%s242 + $0x70] sm:$0xff]
        %v379 = vld [vmem:[%s242 + $0x78] sm:$0xff]
        %v380 = vld [vmem:[%s242 + $0x80] sm:$0xff]
        %v381 = vld [vmem:[%s242 + $0x88] sm:$0xff]
        %v382 = vld [vmem:[%s242 + $0x90] sm:$0xff]
        %v383 = vld [vmem:[%s242 + $0x98] sm:$0xff]
        %v384 = vld [vmem:[%s242 + $0xa0] sm:$0xff]
        %v385 = vld [vmem:[%s242 + $0xa8] sm:$0xff]
        %v386 = vld [vmem:[%s242 + $0xb0] sm:$0xff]
        %v387 = vld [vmem:[%s242 + $0xb8] sm:$0xff]
        %v388 = vld [vmem:[%s242 + $0xc0] sm:$0xff]
        %v389 = vld [vmem:[%s242 + $0xc8] sm:$0xff]
        %v390 = vld [vmem:[%s242 + $0xd0] sm:$0xff]
        %v391 = vld [vmem:[%s242 + $0xd8] sm:$0xff]
        %v392 = vld [vmem:[%s242 + $0xe0] sm:$0xff]
        %v393 = vld [vmem:[%s242 + $0xe8] sm:$0xff]
        %v394 = vld [vmem:[%s242 + $0xf0] sm:$0xff]
        %v395 = vld [vmem:[%s242 + $0xf8] sm:$0xff]
        %v396 = vld [vmem:[%s242 + $0x100] sm:$0xff]
        %v397 = vld [vmem:[%s242 + $0x108] sm:$0xff]
        %v398 = vld [vmem:[%s242 + $0x110] sm:$0xff]
        %v399 = vld [vmem:[%s242 + $0x118] sm:$0xff]
        %v400 = vld [vmem:[%s242 + $0x120] sm:$0xff]
        %v401 = vld [vmem:[%s242 + $0x128] sm:$0xff]
        %v402 = vld [vmem:[%s242 + $0x130] sm:$0xff]
        %v403 = vld [vmem:[%s242 + $0x138] sm:$0xff]
        %v404 = vld [vmem:[%s242 + $0x140] sm:$0xff]
        %v405 = vld [vmem:[%s242 + $0x148] sm:$0xff]
        %v406 = vld [vmem:[%s242 + $0x150] sm:$0xff]
        %v407 = vld [vmem:[%s242 + $0x158] sm:$0xff]
        %v408 = vld [vmem:[%s242 + $0x160] sm:$0xff]
        %v409 = vld [vmem:[%s242 + $0x168] sm:$0xff]
        %v410 = vld [vmem:[%s242 + $0x170] sm:$0xff]
        %v411 = vld [vmem:[%s242 + $0x178] sm:$0xff]
        %v412 = vld [vmem:[%s242 + $0x180] sm:$0xff]
        %v413 = vld [vmem:[%s242 + $0x188] sm:$0xff]
        %v414 = vld [vmem:[%s242 + $0x190] sm:$0xff]
        %v415 = vld [vmem:[%s242 + $0x198] sm:$0xff]
        %v416 = vld [vmem:[%s242 + $0x1a0] sm:$0xff]
        %v417 = vld [vmem:[%s242 + $0x1a8] sm:$0xff]
        %v418 = vld [vmem:[%s242 + $0x1b0] sm:$0xff]
        %v419 = vld [vmem:[%s242 + $0x1b8] sm:$0xff]
        %v420 = vld [vmem:[%s242 + $0x1c0] sm:$0xff]
        %v421 = vld [vmem:[%s242 + $0x1c8] sm:$0xff]
        %v422 = vld [vmem:[%s242 + $0x1d0] sm:$0xff]
        %v423 = vld [vmem:[%s242 + $0x1d8] sm:$0xff]
        %v424 = vld [vmem:[%s242 + $0x1e0] sm:$0xff]
        %v425 = vld [vmem:[%s242 + $0x1e8] sm:$0xff]
        %v426 = vld [vmem:[%s242 + $0x1f0] sm:$0xff]
        %v427 = vld [vmem:[%s242 + $0x1f8] sm:$0xff]
        %v428 = vld [vmem:[%s242 + $0x200] sm:$0xff]
        %v429 = vld [vmem:[%s251] sm:$0xff]
        %v430 = vld [vmem:[%s251 + $0x8] sm:$0xff]
        %v431 = vld [vmem:[%s251 + $0x10] sm:$0xff]
        %v432 = vld [vmem:[%s251 + $0x18] sm:$0xff]
        %v433 = vld [vmem:[%s251 + $0x20] sm:$0xff]
        %v434 = vld [vmem:[%s251 + $0x28] sm:$0xff]
        %v435 = vld [vmem:[%s251 + $0x30] sm:$0xff]
        %v436 = vld [vmem:[%s251 + $0x38] sm:$0xff]
        %v437 = vld [vmem:[%s251 + $0x40] sm:$0xff]
        %v438 = vld [vmem:[%s251 + $0x48] sm:$0xff]
        %v439 = vld [vmem:[%s251 + $0x50] sm:$0xff]
        %v440 = vld [vmem:[%s251 + $0x58] sm:$0xff]
        %v441 = vld [vmem:[%s251 + $0x60] sm:$0xff]
        %v442 = vld [vmem:[%s251 + $0x68] sm:$0xff]
        %v443 = vld [vmem:[%s251 + $0x70] sm:$0xff]
        %v444 = vld [vmem:[%s251 + $0x78] sm:$0xff]
        %v445 = vld [vmem:[%s251 + $0x80] sm:$0xff]
        %v446 = vld [vmem:[%s251 + $0x88] sm:$0xff]
        %v447 = vld [vmem:[%s251 + $0x90] sm:$0xff]
        %v448 = vld [vmem:[%s251 + $0x98] sm:$0xff]
        %v449 = vld [vmem:[%s251 + $0xa0] sm:$0xff]
        %v450 = vld [vmem:[%s251 + $0xa8] sm:$0xff]
        %v451 = vld [vmem:[%s251 + $0xb0] sm:$0xff]
        %v452 = vld [vmem:[%s251 + $0xb8] sm:$0xff]
        %v453 = vld [vmem:[%s251 + $0xc0] sm:$0xff]
        %v454 = vld [vmem:[%s251 + $0xc8] sm:$0xff]
        %v455 = vld [vmem:[%s251 + $0xd0] sm:$0xff]
        %v456 = vld [vmem:[%s251 + $0xd8] sm:$0xff]
        %v457 = vld [vmem:[%s251 + $0xe0] sm:$0xff]
        %v458 = vld [vmem:[%s251 + $0xe8] sm:$0xff]
        %v459 = vld [vmem:[%s251 + $0xf0] sm:$0xff]
        %v460 = vld [vmem:[%s251 + $0xf8] sm:$0xff]
        %v461 = vld [vmem:[%s251 + $0x100] sm:$0xff]
        %v462 = vld [vmem:[%s251 + $0x108] sm:$0xff]
        %v463 = vld [vmem:[%s251 + $0x110] sm:$0xff]
        %v464 = vld [vmem:[%s251 + $0x118] sm:$0xff]
        %v465 = vld [vmem:[%s251 + $0x120] sm:$0xff]
        %v466 = vld [vmem:[%s251 + $0x128] sm:$0xff]
        %v467 = vld [vmem:[%s251 + $0x130] sm:$0xff]
        %v468 = vld [vmem:[%s251 + $0x138] sm:$0xff]
        %v469 = vld [vmem:[%s251 + $0x140] sm:$0xff]
        %v470 = vld [vmem:[%s251 + $0x148] sm:$0xff]
        %v471 = vld [vmem:[%s251 + $0x150] sm:$0xff]
        %v472 = vld [vmem:[%s251 + $0x158] sm:$0xff]
        %v473 = vld [vmem:[%s251 + $0x160] sm:$0xff]
        %v474 = vld [vmem:[%s251 + $0x168] sm:$0xff]
        %v475 = vld [vmem:[%s251 + $0x170] sm:$0xff]
        %v476 = vld [vmem:[%s251 + $0x178] sm:$0xff]
        %v477 = vld [vmem:[%s251 + $0x180] sm:$0xff]
        %v478 = vld [vmem:[%s251 + $0x188] sm:$0xff]
        %v479 = vld [vmem:[%s251 + $0x190] sm:$0xff]
        %v480 = vld [vmem:[%s251 + $0x198] sm:$0xff]
        %v481 = vld [vmem:[%s251 + $0x1a0] sm:$0xff]
        %v482 = vld [vmem:[%s251 + $0x1a8] sm:$0xff]
        %v483 = vld [vmem:[%s251 + $0x1b0] sm:$0xff]
        %v484 = vld [vmem:[%s251 + $0x1b8] sm:$0xff]
        %v485 = vld [vmem:[%s251 + $0x1c0] sm:$0xff]
        %v486 = vld [vmem:[%s251 + $0x1c8] sm:$0xff]
        %v487 = vld [vmem:[%s251 + $0x1d0] sm:$0xff]
        %v488 = vld [vmem:[%s251 + $0x1d8] sm:$0xff]
        %v489 = vld [vmem:[%s251 + $0x1e0] sm:$0xff]
        %v490 = vld [vmem:[%s251 + $0x1e8] sm:$0xff]
        %v491 = vld [vmem:[%s251 + $0x1f0] sm:$0xff]
        %v492 = vld [vmem:[%s251 + $0x1f8] sm:$0xff]
        %v493 = vld [vmem:[%s251 + $0x200] sm:$0xff]
        %v494 = vsub.f32 %v429, %v299
        %v495 = vsub.f32 %v430, %v300
        %v496 = vsub.f32 %v431, %v301
        %v497 = vsub.f32 %v432, %v302
        %v498 = vsub.f32 %v433, %v303
        %v499 = vsub.f32 %v434, %v304
        %v500 = vsub.f32 %v435, %v305
        %v501 = vsub.f32 %v436, %v306
        %v502 = vsub.f32 %v437, %v307
        %v503 = vsub.f32 %v438, %v308
        %v504 = vsub.f32 %v439, %v309
        %v505 = vsub.f32 %v440, %v310
        %v506 = vsub.f32 %v441, %v311
        %v507 = vsub.f32 %v442, %v312
        %v508 = vsub.f32 %v443, %v313
        %v509 = vsub.f32 %v444, %v314
        %v510 = vsub.f32 %v445, %v315
        %v511 = vsub.f32 %v446, %v316
        %v512 = vsub.f32 %v447, %v317
        %v513 = vsub.f32 %v448, %v318
        %v514 = vsub.f32 %v449, %v319
        %v515 = vsub.f32 %v450, %v320
        %v516 = vsub.f32 %v451, %v321
        %v517 = vsub.f32 %v452, %v322
        %v518 = vsub.f32 %v453, %v323
        %v519 = vsub.f32 %v454, %v324
        %v520 = vsub.f32 %v455, %v325
        %v521 = vsub.f32 %v456, %v326
        %v522 = vsub.f32 %v457, %v327
        %v523 = vsub.f32 %v458, %v328
        %v524 = vsub.f32 %v459, %v329
        %v525 = vsub.f32 %v460, %v330
        %v526 = vsub.f32 %v461, %v331
        %v527 = vsub.f32 %v462, %v332
        %v528 = vsub.f32 %v463, %v333
        %v529 = vsub.f32 %v464, %v334
        %v530 = vsub.f32 %v465, %v335
        %v531 = vsub.f32 %v466, %v336
        %v532 = vsub.f32 %v467, %v337
        %v533 = vsub.f32 %v468, %v338
        %v534 = vsub.f32 %v469, %v339
        %v535 = vsub.f32 %v470, %v340
        %v536 = vsub.f32 %v471, %v341
        %v537 = vsub.f32 %v472, %v342
        %v538 = vsub.f32 %v473, %v343
        %v539 = vsub.f32 %v474, %v344
        %v540 = vsub.f32 %v475, %v345
        %v541 = vsub.f32 %v476, %v346
        %v542 = vsub.f32 %v477, %v347
        %v543 = vsub.f32 %v478, %v348
        %v544 = vsub.f32 %v479, %v349
        %v545 = vsub.f32 %v480, %v350
        %v546 = vsub.f32 %v481, %v351
        %v547 = vsub.f32 %v482, %v352
        %v548 = vsub.f32 %v483, %v353
        %v549 = vsub.f32 %v484, %v354
        %v550 = vsub.f32 %v485, %v355
        %v551 = vsub.f32 %v486, %v356
        %v552 = vsub.f32 %v487, %v357
        %v553 = vsub.f32 %v488, %v358
        %v554 = vsub.f32 %v489, %v359
        %v555 = vsub.f32 %v490, %v360
        %v556 = vsub.f32 %v491, %v361
        %v557 = vsub.f32 %v492, %v362
        %v558 = vsub.f32 %v493, %v363
        %v559 = vmul.f32 %v494, %v494
        %v560 = vmul.f32 %v495, %v495
        %v561 = vmul.f32 %v496, %v496
        %v562 = vmul.f32 %v497, %v497
        %v563 = vmul.f32 %v498, %v498
        %v564 = vmul.f32 %v499, %v499
        %v565 = vmul.f32 %v500, %v500
        %v566 = vmul.f32 %v501, %v501
        %v567 = vmul.f32 %v502, %v502
        %v568 = vmul.f32 %v503, %v503
        %v569 = vmul.f32 %v504, %v504
        %v570 = vmul.f32 %v505, %v505
        %v571 = vmul.f32 %v506, %v506
        %v572 = vmul.f32 %v507, %v507
        %v573 = vmul.f32 %v508, %v508
        %v574 = vmul.f32 %v509, %v509
        %v575 = vmul.f32 %v510, %v510
        %v576 = vmul.f32 %v511, %v511
        %v577 = vmul.f32 %v512, %v512
        %v578 = vmul.f32 %v513, %v513
        %v579 = vmul.f32 %v514, %v514
        %v580 = vmul.f32 %v515, %v515
        %v581 = vmul.f32 %v516, %v516
        %v582 = vmul.f32 %v517, %v517
        %v583 = vmul.f32 %v518, %v518
        %v584 = vmul.f32 %v519, %v519
        %v585 = vmul.f32 %v520, %v520
        %v586 = vmul.f32 %v521, %v521
        %v587 = vmul.f32 %v522, %v522
        %v588 = vmul.f32 %v523, %v523
        %v589 = vmul.f32 %v524, %v524
        %v590 = vmul.f32 %v525, %v525
        %v591 = vmul.f32 %v526, %v526
        %v592 = vmul.f32 %v527, %v527
        %v593 = vmul.f32 %v528, %v528
        %v594 = vmul.f32 %v529, %v529
        %v595 = vmul.f32 %v530, %v530
        %v596 = vmul.f32 %v531, %v531
        %v597 = vmul.f32 %v532, %v532
        %v598 = vmul.f32 %v533, %v533
        %v599 = vmul.f32 %v534, %v534
        %v600 = vmul.f32 %v535, %v535
        %v601 = vmul.f32 %v536, %v536
        %v602 = vmul.f32 %v537, %v537
        %v603 = vmul.f32 %v538, %v538
        %v604 = vmul.f32 %v539, %v539
        %v605 = vmul.f32 %v540, %v540
        %v606 = vmul.f32 %v541, %v541
        %v607 = vmul.f32 %v542, %v542
        %v608 = vmul.f32 %v543, %v543
        %v609 = vmul.f32 %v544, %v544
        %v610 = vmul.f32 %v545, %v545
        %v611 = vmul.f32 %v546, %v546
        %v612 = vmul.f32 %v547, %v547
        %v613 = vmul.f32 %v548, %v548
        %v614 = vmul.f32 %v549, %v549
        %v615 = vmul.f32 %v550, %v550
        %v616 = vmul.f32 %v551, %v551
        %v617 = vmul.f32 %v552, %v552
        %v618 = vmul.f32 %v553, %v553
        %v619 = vmul.f32 %v554, %v554
        %v620 = vmul.f32 %v555, %v555
        %v621 = vmul.f32 %v556, %v556
        %v622 = vmul.f32 %v557, %v557
        %v623 = vmul.f32 %v558, %v558
        %v624 = vrcp.pop %v364
        %v625 = vmul.f32 %v559, %v624
        %v626 = vrcp.pop %v365
        %v627 = vmul.f32 %v560, %v626
        %v628 = vrcp.pop %v366
        %v629 = vmul.f32 %v561, %v628
        %v630 = vrcp.pop %v367
        %v631 = vmul.f32 %v562, %v630
        %v632 = vrcp.pop %v368
        %v633 = vmul.f32 %v563, %v632
        %v634 = vrcp.pop %v369
        %v635 = vmul.f32 %v564, %v634
        %v636 = vrcp.pop %v370
        %v637 = vmul.f32 %v565, %v636
        %v638 = vrcp.pop %v371
        %v639 = vmul.f32 %v566, %v638
        %v640 = vrcp.pop %v372
        %v641 = vmul.f32 %v567, %v640
        %v642 = vrcp.pop %v373
        %v643 = vmul.f32 %v568, %v642
        %v644 = vrcp.pop %v374
        %v645 = vmul.f32 %v569, %v644
        %v646 = vrcp.pop %v375
        %v647 = vmul.f32 %v570, %v646
        %v648 = vrcp.pop %v376
        %v649 = vmul.f32 %v571, %v648
        %v650 = vrcp.pop %v377
        %v651 = vmul.f32 %v572, %v650
        %v652 = vrcp.pop %v378
        %v653 = vmul.f32 %v573, %v652
        %v654 = vrcp.pop %v379
        %v655 = vmul.f32 %v574, %v654
        %v656 = vrcp.pop %v380
        %v657 = vmul.f32 %v575, %v656
        %v658 = vrcp.pop %v381
        %v659 = vmul.f32 %v576, %v658
        %v660 = vrcp.pop %v382
        %v661 = vmul.f32 %v577, %v660
        %v662 = vrcp.pop %v383
        %v663 = vmul.f32 %v578, %v662
        %v664 = vrcp.pop %v384
        %v665 = vmul.f32 %v579, %v664
        %v666 = vrcp.pop %v385
        %v667 = vmul.f32 %v580, %v666
        %v668 = vrcp.pop %v386
        %v669 = vmul.f32 %v581, %v668
        %v670 = vrcp.pop %v387
        %v671 = vmul.f32 %v582, %v670
        %v672 = vrcp.pop %v388
        %v673 = vmul.f32 %v583, %v672
        %v674 = vrcp.pop %v389
        %v675 = vmul.f32 %v584, %v674
        %v676 = vrcp.pop %v390
        %v677 = vmul.f32 %v585, %v676
        %v678 = vrcp.pop %v391
        %v679 = vmul.f32 %v586, %v678
        %v680 = vrcp.pop %v392
        %v681 = vmul.f32 %v587, %v680
        %v682 = vrcp.pop %v393
        %v683 = vmul.f32 %v588, %v682
        %v684 = vrcp.pop %v394
        %v685 = vmul.f32 %v589, %v684
        %v686 = vrcp.pop %v395
        %v687 = vmul.f32 %v590, %v686
        %v688 = vrcp.pop %v396
        %v689 = vmul.f32 %v591, %v688
        %v690 = vrcp.pop %v397
        %v691 = vmul.f32 %v592, %v690
        %v692 = vrcp.pop %v398
        %v693 = vmul.f32 %v593, %v692
        %v694 = vrcp.pop %v399
        %v695 = vmul.f32 %v594, %v694
        %v696 = vrcp.pop %v400
        %v697 = vmul.f32 %v595, %v696
        %v698 = vrcp.pop %v401
        %v699 = vmul.f32 %v596, %v698
        %v700 = vrcp.pop %v402
        %v701 = vmul.f32 %v597, %v700
        %v702 = vrcp.pop %v403
        %v703 = vmul.f32 %v598, %v702
        %v704 = vrcp.pop %v404
        %v705 = vmul.f32 %v599, %v704
        %v706 = vrcp.pop %v405
        %v707 = vmul.f32 %v600, %v706
        %v708 = vrcp.pop %v406
        %v709 = vmul.f32 %v601, %v708
        %v710 = vrcp.pop %v407
        %v711 = vmul.f32 %v602, %v710
        %v712 = vrcp.pop %v408
        %v713 = vmul.f32 %v603, %v712
        %v714 = vrcp.pop %v409
        %v715 = vmul.f32 %v604, %v714
        %v716 = vrcp.pop %v410
        %v717 = vmul.f32 %v605, %v716
        %v718 = vrcp.pop %v411
        %v719 = vmul.f32 %v606, %v718
        %v720 = vrcp.pop %v412
        %v721 = vmul.f32 %v607, %v720
        %v722 = vrcp.pop %v413
        %v723 = vmul.f32 %v608, %v722
        %v724 = vrcp.pop %v414
        %v725 = vmul.f32 %v609, %v724
        %v726 = vrcp.pop %v415
        %v727 = vmul.f32 %v610, %v726
        %v728 = vrcp.pop %v416
        %v729 = vmul.f32 %v611, %v728
        %v730 = vrcp.pop %v417
        %v731 = vmul.f32 %v612, %v730
        %v732 = vrcp.pop %v418
        %v733 = vmul.f32 %v613, %v732
        %v734 = vrcp.pop %v419
        %v735 = vmul.f32 %v614, %v734
        %v736 = vrcp.pop %v420
        %v737 = vmul.f32 %v615, %v736
        %v738 = vrcp.pop %v421
        %v739 = vmul.f32 %v616, %v738
        %v740 = vrcp.pop %v422
        %v741 = vmul.f32 %v617, %v740
        %v742 = vrcp.pop %v423
        %v743 = vmul.f32 %v618, %v742
        %v744 = vrcp.pop %v424
        %v745 = vmul.f32 %v619, %v744
        %v746 = vrcp.pop %v425
        %v747 = vmul.f32 %v620, %v746
        %v748 = vrcp.pop %v426
        %v749 = vmul.f32 %v621, %v748
        %v750 = vrcp.pop %v427
        %v751 = vmul.f32 %v622, %v750
        %v752 = vrcp.pop %v428
        %v753 = vmul.f32 %v623, %v752
        %v754 = vlog2.pop %v364
        %v755 = vmul.f32 %v754, 0.6931472
        %v756 = vlog2.pop %v365
        %v757 = vmul.f32 %v756, 0.6931472
        %v758 = vlog2.pop %v366
        %v759 = vmul.f32 %v758, 0.6931472
        %v760 = vlog2.pop %v367
        %v761 = vmul.f32 %v760, 0.6931472
        %v762 = vlog2.pop %v368
        %v763 = vmul.f32 %v762, 0.6931472
        %v764 = vlog2.pop %v369
        %v765 = vmul.f32 %v764, 0.6931472
        %v766 = vlog2.pop %v370
        %v767 = vmul.f32 %v766, 0.6931472
        %v768 = vlog2.pop %v371
        %v769 = vmul.f32 %v768, 0.6931472
        %v770 = vlog2.pop %v372
        %v771 = vmul.f32 %v770, 0.6931472
        %v772 = vlog2.pop %v373
        %v773 = vmul.f32 %v772, 0.6931472
        %v774 = vlog2.pop %v374
        %v775 = vmul.f32 %v774, 0.6931472
        %v776 = vlog2.pop %v375
        %v777 = vmul.f32 %v776, 0.6931472
        %v778 = vlog2.pop %v376
        %v779 = vmul.f32 %v778, 0.6931472
        %v780 = vlog2.pop %v377
        %v781 = vmul.f32 %v780, 0.6931472
        %v782 = vlog2.pop %v378
        %v783 = vmul.f32 %v782, 0.6931472
        %v784 = vlog2.pop %v379
        %v785 = vmul.f32 %v784, 0.6931472
        %v786 = vlog2.pop %v380
        %v787 = vmul.f32 %v786, 0.6931472
        %v788 = vlog2.pop %v381
        %v789 = vmul.f32 %v788, 0.6931472
        %v790 = vlog2.pop %v382
        %v791 = vmul.f32 %v790, 0.6931472
        %v792 = vlog2.pop %v383
        %v793 = vmul.f32 %v792, 0.6931472
        %v794 = vlog2.pop %v384
        %v795 = vmul.f32 %v794, 0.6931472
        %v796 = vlog2.pop %v385
        %v797 = vmul.f32 %v796, 0.6931472
        %v798 = vlog2.pop %v386
        %v799 = vmul.f32 %v798, 0.6931472
        %v800 = vlog2.pop %v387
        %v801 = vmul.f32 %v800, 0.6931472
        %v802 = vlog2.pop %v388
        %v803 = vmul.f32 %v802, 0.6931472
        %v804 = vlog2.pop %v389
        %v805 = vmul.f32 %v804, 0.6931472
        %v806 = vlog2.pop %v390
        %v807 = vmul.f32 %v806, 0.6931472
        %v808 = vlog2.pop %v391
        %v809 = vmul.f32 %v808, 0.6931472
        %v810 = vlog2.pop %v392
        %v811 = vmul.f32 %v810, 0.6931472
        %v812 = vlog2.pop %v393
        %v813 = vmul.f32 %v812, 0.6931472
        %v814 = vlog2.pop %v394
        %v815 = vmul.f32 %v814, 0.6931472
        %v816 = vlog2.pop %v395
        %v817 = vmul.f32 %v816, 0.6931472
        %v818 = vlog2.pop %v396
        %v819 = vmul.f32 %v818, 0.6931472
        %v820 = vlog2.pop %v397
        %v821 = vmul.f32 %v820, 0.6931472
        %v822 = vlog2.pop %v398
        %v823 = vmul.f32 %v822, 0.6931472
        %v824 = vlog2.pop %v399
        %v825 = vmul.f32 %v824, 0.6931472
        %v826 = vlog2.pop %v400
        %v827 = vmul.f32 %v826, 0.6931472
        %v828 = vlog2.pop %v401
        %v829 = vmul.f32 %v828, 0.6931472
        %v830 = vlog2.pop %v402
        %v831 = vmul.f32 %v830, 0.6931472
        %v832 = vlog2.pop %v403
        %v833 = vmul.f32 %v832, 0.6931472
        %v834 = vlog2.pop %v404
        %v835 = vmul.f32 %v834, 0.6931472
        %v836 = vlog2.pop %v405
        %v837 = vmul.f32 %v836, 0.6931472
        %v838 = vlog2.pop %v406
        %v839 = vmul.f32 %v838, 0.6931472
        %v840 = vlog2.pop %v407
        %v841 = vmul.f32 %v840, 0.6931472
        %v842 = vlog2.pop %v408
        %v843 = vmul.f32 %v842, 0.6931472
        %v844 = vlog2.pop %v409
        %v845 = vmul.f32 %v844, 0.6931472
        %v846 = vlog2.pop %v410
        %v847 = vmul.f32 %v846, 0.6931472
        %v848 = vlog2.pop %v411
        %v849 = vmul.f32 %v848, 0.6931472
        %v850 = vlog2.pop %v412
        %v851 = vmul.f32 %v850, 0.6931472
        %v852 = vlog2.pop %v413
        %v853 = vmul.f32 %v852, 0.6931472
        %v854 = vlog2.pop %v414
        %v855 = vmul.f32 %v854, 0.6931472
        %v856 = vlog2.pop %v415
        %v857 = vmul.f32 %v856, 0.6931472
        %v858 = vlog2.pop %v416
        %v859 = vmul.f32 %v858, 0.6931472
        %v860 = vlog2.pop %v417
        %v861 = vmul.f32 %v860, 0.6931472
        %v862 = vlog2.pop %v418
        %v863 = vmul.f32 %v862, 0.6931472
        %v864 = vlog2.pop %v419
        %v865 = vmul.f32 %v864, 0.6931472
        %v866 = vlog2.pop %v420
        %v867 = vmul.f32 %v866, 0.6931472
        %v868 = vlog2.pop %v421
        %v869 = vmul.f32 %v868, 0.6931472
        %v870 = vlog2.pop %v422
        %v871 = vmul.f32 %v870, 0.6931472
        %v872 = vlog2.pop %v423
        %v873 = vmul.f32 %v872, 0.6931472
        %v874 = vlog2.pop %v424
        %v875 = vmul.f32 %v874, 0.6931472
        %v876 = vlog2.pop %v425
        %v877 = vmul.f32 %v876, 0.6931472
        %v878 = vlog2.pop %v426
        %v879 = vmul.f32 %v878, 0.6931472
        %v880 = vlog2.pop %v427
        %v881 = vmul.f32 %v880, 0.6931472
        %v882 = vlog2.pop %v428
        %v883 = vmul.f32 %v882, 0.6931472
        %v884 = vadd.f32 %v625, %v755
        %v885 = vadd.f32 %v627, %v757
        %v886 = vadd.f32 %v629, %v759
        %v887 = vadd.f32 %v631, %v761
        %v888 = vadd.f32 %v633, %v763
        %v889 = vadd.f32 %v635, %v765
        %v890 = vadd.f32 %v637, %v767
        %v891 = vadd.f32 %v639, %v769
        %v892 = vadd.f32 %v641, %v771
        %v893 = vadd.f32 %v643, %v773
        %v894 = vadd.f32 %v645, %v775
        %v895 = vadd.f32 %v647, %v777
        %v896 = vadd.f32 %v649, %v779
        %v897 = vadd.f32 %v651, %v781
        %v898 = vadd.f32 %v653, %v783
        %v899 = vadd.f32 %v655, %v785
        %v900 = vadd.f32 %v657, %v787
        %v901 = vadd.f32 %v659, %v789
        %v902 = vadd.f32 %v661, %v791
        %v903 = vadd.f32 %v663, %v793
        %v904 = vadd.f32 %v665, %v795
        %v905 = vadd.f32 %v667, %v797
        %v906 = vadd.f32 %v669, %v799
        %v907 = vadd.f32 %v671, %v801
        %v908 = vadd.f32 %v673, %v803
        %v909 = vadd.f32 %v675, %v805
        %v910 = vadd.f32 %v677, %v807
        %v911 = vadd.f32 %v679, %v809
        %v912 = vadd.f32 %v681, %v811
        %v913 = vadd.f32 %v683, %v813
        %v914 = vadd.f32 %v685, %v815
        %v915 = vadd.f32 %v687, %v817
        %v916 = vadd.f32 %v689, %v819
        %v917 = vadd.f32 %v691, %v821
        %v918 = vadd.f32 %v693, %v823
        %v919 = vadd.f32 %v695, %v825
        %v920 = vadd.f32 %v697, %v827
        %v921 = vadd.f32 %v699, %v829
        %v922 = vadd.f32 %v701, %v831
        %v923 = vadd.f32 %v703, %v833
        %v924 = vadd.f32 %v705, %v835
        %v925 = vadd.f32 %v707, %v837
        %v926 = vadd.f32 %v709, %v839
        %v927 = vadd.f32 %v711, %v841
        %v928 = vadd.f32 %v713, %v843
        %v929 = vadd.f32 %v715, %v845
        %v930 = vadd.f32 %v717, %v847
        %v931 = vadd.f32 %v719, %v849
        %v932 = vadd.f32 %v721, %v851
        %v933 = vadd.f32 %v723, %v853
        %v934 = vadd.f32 %v725, %v855
        %v935 = vadd.f32 %v727, %v857
        %v936 = vadd.f32 %v729, %v859
        %v937 = vadd.f32 %v731, %v861
        %v938 = vadd.f32 %v733, %v863
        %v939 = vadd.f32 %v735, %v865
        %v940 = vadd.f32 %v737, %v867
        %v941 = vadd.f32 %v739, %v869
        %v942 = vadd.f32 %v741, %v871
        %v943 = vadd.f32 %v743, %v873
        %v944 = vadd.f32 %v745, %v875
        %v945 = vadd.f32 %v747, %v877
        %v946 = vadd.f32 %v749, %v879
        %v947 = vadd.f32 %v751, %v881
        %v948 = vadd.f32 %v753, %v883
        %s949 = smul.u32 %s23, 520
        %v950 = vlaneseq
        %v951 = vshrl.u32 %v950, 7
        %v952 = vadd.s32 %v951, 8
        %v953 = vadd.s32 %v951, 16
        %v954 = vadd.s32 %v951, 24
        %v955 = vadd.s32 %v951, 32
        %v956 = vadd.s32 %v951, 40
        %v957 = vadd.s32 %v951, 48
        %v958 = vadd.s32 %v951, 56
        %v959 = vadd.s32 %v951, 64
        %v960 = vadd.s32 %v951, 72
        %v961 = vadd.s32 %v951, 80
        %v962 = vadd.s32 %v951, 88
        %v963 = vadd.s32 %v951, 96
        %v964 = vadd.s32 %v951, 104
        %v965 = vadd.s32 %v951, 112
        %v966 = vadd.s32 %v951, 120
        %v967 = vadd.s32 %v951, 128
        %v968 = vadd.s32 %v951, 136
        %v969 = vadd.s32 %v951, 144
        %v970 = vadd.s32 %v951, 152
        %v971 = vadd.s32 %v951, 160
        %v972 = vadd.s32 %v951, 168
        %v973 = vadd.s32 %v951, 176
        %v974 = vadd.s32 %v951, 184
        %v975 = vadd.s32 %v951, 192
        %v976 = vadd.s32 %v951, 200
        %v977 = vadd.s32 %v951, 208
        %v978 = vadd.s32 %v951, 216
        %v979 = vadd.s32 %v951, 224
        %v980 = vadd.s32 %v951, 232
        %v981 = vadd.s32 %v951, 240
        %v982 = vadd.s32 %v951, 248
        %v983 = vadd.s32 %v951, 256
        %v984 = vadd.s32 %v951, 264
        %v985 = vadd.s32 %v951, 272
        %v986 = vadd.s32 %v951, 280
        %v987 = vadd.s32 %v951, 288
        %v988 = vadd.s32 %v951, 296
        %v989 = vadd.s32 %v951, 304
        %v990 = vadd.s32 %v951, 312
        %v991 = vadd.s32 %v951, 320
        %v992 = vadd.s32 %v951, 328
        %v993 = vadd.s32 %v951, 336
        %v994 = vadd.s32 %v951, 344
        %v995 = vadd.s32 %v951, 352
        %v996 = vadd.s32 %v951, 360
        %v997 = vadd.s32 %v951, 368
        %v998 = vadd.s32 %v951, 376
        %v999 = vadd.s32 %v951, 384
        %v1000 = vadd.s32 %v951, 392
        %v1001 = vadd.s32 %v951, 400
        %v1002 = vadd.s32 %v951, 408
        %v1003 = vadd.s32 %v951, 416
        %v1004 = vadd.s32 %v951, 424
        %v1005 = vadd.s32 %v951, 432
        %v1006 = vadd.s32 %v951, 440
        %v1007 = vadd.s32 %v951, 448
        %v1008 = vadd.s32 %v951, 456
        %v1009 = vadd.s32 %v951, 464
        %v1010 = vadd.s32 %v951, 472
        %v1011 = vadd.s32 %v951, 480
        %v1012 = vadd.s32 %v951, 488
        %v1013 = vadd.s32 %v951, 496
        %v1014 = vadd.s32 %v951, 504
        %v1015 = vadd.s32 %v951, 512
        %v1016 = vstv %s949
        %v1017 = vadd.s32 %v1016, %v951
        %v1018 = vadd.s32 %v1016, %v952
        %v1019 = vadd.s32 %v1016, %v953
        %v1020 = vadd.s32 %v1016, %v954
        %v1021 = vadd.s32 %v1016, %v955
        %v1022 = vadd.s32 %v1016, %v956
        %v1023 = vadd.s32 %v1016, %v957
        %v1024 = vadd.s32 %v1016, %v958
        %v1025 = vadd.s32 %v1016, %v959
        %v1026 = vadd.s32 %v1016, %v960
        %v1027 = vadd.s32 %v1016, %v961
        %v1028 = vadd.s32 %v1016, %v962
        %v1029 = vadd.s32 %v1016, %v963
        %v1030 = vadd.s32 %v1016, %v964
        %v1031 = vadd.s32 %v1016, %v965
        %v1032 = vadd.s32 %v1016, %v966
        %v1033 = vadd.s32 %v1016, %v967
        %v1034 = vadd.s32 %v1016, %v968
        %v1035 = vadd.s32 %v1016, %v969
        %v1036 = vadd.s32 %v1016, %v970
        %v1037 = vadd.s32 %v1016, %v971
        %v1038 = vadd.s32 %v1016, %v972
        %v1039 = vadd.s32 %v1016, %v973
        %v1040 = vadd.s32 %v1016, %v974
        %v1041 = vadd.s32 %v1016, %v975
        %v1042 = vadd.s32 %v1016, %v976
        %v1043 = vadd.s32 %v1016, %v977
        %v1044 = vadd.s32 %v1016, %v978
        %v1045 = vadd.s32 %v1016, %v979
        %v1046 = vadd.s32 %v1016, %v980
        %v1047 = vadd.s32 %v1016, %v981
        %v1048 = vadd.s32 %v1016, %v982
        %v1049 = vadd.s32 %v1016, %v983
        %v1050 = vadd.s32 %v1016, %v984
        %v1051 = vadd.s32 %v1016, %v985
        %v1052 = vadd.s32 %v1016, %v986
        %v1053 = vadd.s32 %v1016, %v987
        %v1054 = vadd.s32 %v1016, %v988
        %v1055 = vadd.s32 %v1016, %v989
        %v1056 = vadd.s32 %v1016, %v990
        %v1057 = vadd.s32 %v1016, %v991
        %v1058 = vadd.s32 %v1016, %v992
        %v1059 = vadd.s32 %v1016, %v993
        %v1060 = vadd.s32 %v1016, %v994
        %v1061 = vadd.s32 %v1016, %v995
        %v1062 = vadd.s32 %v1016, %v996
        %v1063 = vadd.s32 %v1016, %v997
        %v1064 = vadd.s32 %v1016, %v998
        %v1065 = vadd.s32 %v1016, %v999
        %v1066 = vadd.s32 %v1016, %v1000
        %v1067 = vadd.s32 %v1016, %v1001
        %v1068 = vadd.s32 %v1016, %v1002
        %v1069 = vadd.s32 %v1016, %v1003
        %v1070 = vadd.s32 %v1016, %v1004
        %v1071 = vadd.s32 %v1016, %v1005
        %v1072 = vadd.s32 %v1016, %v1006
        %v1073 = vadd.s32 %v1016, %v1007
        %v1074 = vadd.s32 %v1016, %v1008
        %v1075 = vadd.s32 %v1016, %v1009
        %v1076 = vadd.s32 %v1016, %v1010
        %v1077 = vadd.s32 %v1016, %v1011
        %v1078 = vadd.s32 %v1016, %v1012
        %v1079 = vadd.s32 %v1016, %v1013
        %v1080 = vadd.s32 %v1016, %v1014
        %v1081 = vadd.s32 %v1016, %v1015
        %v1082 = vlaneseq
        %v1083 = vand.u32 %v1082, 127
        %v1084 = vmul.u32 %v1017, 128
        %v1085 = vmul.u32 %v1018, 128
        %v1086 = vmul.u32 %v1019, 128
        %v1087 = vmul.u32 %v1020, 128
        %v1088 = vmul.u32 %v1021, 128
        %v1089 = vmul.u32 %v1022, 128
        %v1090 = vmul.u32 %v1023, 128
        %v1091 = vmul.u32 %v1024, 128
        %v1092 = vmul.u32 %v1025, 128
        %v1093 = vmul.u32 %v1026, 128
        %v1094 = vmul.u32 %v1027, 128
        %v1095 = vmul.u32 %v1028, 128
        %v1096 = vmul.u32 %v1029, 128
        %v1097 = vmul.u32 %v1030, 128
        %v1098 = vmul.u32 %v1031, 128
        %v1099 = vmul.u32 %v1032, 128
        %v1100 = vmul.u32 %v1033, 128
        %v1101 = vmul.u32 %v1034, 128
        %v1102 = vmul.u32 %v1035, 128
        %v1103 = vmul.u32 %v1036, 128
        %v1104 = vmul.u32 %v1037, 128
        %v1105 = vmul.u32 %v1038, 128
        %v1106 = vmul.u32 %v1039, 128
        %v1107 = vmul.u32 %v1040, 128
        %v1108 = vmul.u32 %v1041, 128
        %v1109 = vmul.u32 %v1042, 128
        %v1110 = vmul.u32 %v1043, 128
        %v1111 = vmul.u32 %v1044, 128
        %v1112 = vmul.u32 %v1045, 128
        %v1113 = vmul.u32 %v1046, 128
        %v1114 = vmul.u32 %v1047, 128
        %v1115 = vmul.u32 %v1048, 128
        %v1116 = vmul.u32 %v1049, 128
        %v1117 = vmul.u32 %v1050, 128
        %v1118 = vmul.u32 %v1051, 128
        %v1119 = vmul.u32 %v1052, 128
        %v1120 = vmul.u32 %v1053, 128
        %v1121 = vmul.u32 %v1054, 128
        %v1122 = vmul.u32 %v1055, 128
        %v1123 = vmul.u32 %v1056, 128
        %v1124 = vmul.u32 %v1057, 128
        %v1125 = vmul.u32 %v1058, 128
        %v1126 = vmul.u32 %v1059, 128
        %v1127 = vmul.u32 %v1060, 128
        %v1128 = vmul.u32 %v1061, 128
        %v1129 = vmul.u32 %v1062, 128
        %v1130 = vmul.u32 %v1063, 128
        %v1131 = vmul.u32 %v1064, 128
        %v1132 = vmul.u32 %v1065, 128
        %v1133 = vmul.u32 %v1066, 128
        %v1134 = vmul.u32 %v1067, 128
        %v1135 = vmul.u32 %v1068, 128
        %v1136 = vmul.u32 %v1069, 128
        %v1137 = vmul.u32 %v1070, 128
        %v1138 = vmul.u32 %v1071, 128
        %v1139 = vmul.u32 %v1072, 128
        %v1140 = vmul.u32 %v1073, 128
        %v1141 = vmul.u32 %v1074, 128
        %v1142 = vmul.u32 %v1075, 128
        %v1143 = vmul.u32 %v1076, 128
        %v1144 = vmul.u32 %v1077, 128
        %v1145 = vmul.u32 %v1078, 128
        %v1146 = vmul.u32 %v1079, 128
        %v1147 = vmul.u32 %v1080, 128
        %v1148 = vmul.u32 %v1081, 128
        %v1149 = vadd.s32 %v1084, %v1083
        %v1150 = vadd.s32 %v1085, %v1083
        %v1151 = vadd.s32 %v1086, %v1083
        %v1152 = vadd.s32 %v1087, %v1083
        %v1153 = vadd.s32 %v1088, %v1083
        %v1154 = vadd.s32 %v1089, %v1083
        %v1155 = vadd.s32 %v1090, %v1083
        %v1156 = vadd.s32 %v1091, %v1083
        %v1157 = vadd.s32 %v1092, %v1083
        %v1158 = vadd.s32 %v1093, %v1083
        %v1159 = vadd.s32 %v1094, %v1083
        %v1160 = vadd.s32 %v1095, %v1083
        %v1161 = vadd.s32 %v1096, %v1083
        %v1162 = vadd.s32 %v1097, %v1083
        %v1163 = vadd.s32 %v1098, %v1083
        %v1164 = vadd.s32 %v1099, %v1083
        %v1165 = vadd.s32 %v1100, %v1083
        %v1166 = vadd.s32 %v1101, %v1083
        %v1167 = vadd.s32 %v1102, %v1083
        %v1168 = vadd.s32 %v1103, %v1083
        %v1169 = vadd.s32 %v1104, %v1083
        %v1170 = vadd.s32 %v1105, %v1083
        %v1171 = vadd.s32 %v1106, %v1083
        %v1172 = vadd.s32 %v1107, %v1083
        %v1173 = vadd.s32 %v1108, %v1083
        %v1174 = vadd.s32 %v1109, %v1083
        %v1175 = vadd.s32 %v1110, %v1083
        %v1176 = vadd.s32 %v1111, %v1083
        %v1177 = vadd.s32 %v1112, %v1083
        %v1178 = vadd.s32 %v1113, %v1083
        %v1179 = vadd.s32 %v1114, %v1083
        %v1180 = vadd.s32 %v1115, %v1083
        %v1181 = vadd.s32 %v1116, %v1083
        %v1182 = vadd.s32 %v1117, %v1083
        %v1183 = vadd.s32 %v1118, %v1083
        %v1184 = vadd.s32 %v1119, %v1083
        %v1185 = vadd.s32 %v1120, %v1083
        %v1186 = vadd.s32 %v1121, %v1083
        %v1187 = vadd.s32 %v1122, %v1083
        %v1188 = vadd.s32 %v1123, %v1083
        %v1189 = vadd.s32 %v1124, %v1083
        %v1190 = vadd.s32 %v1125, %v1083
        %v1191 = vadd.s32 %v1126, %v1083
        %v1192 = vadd.s32 %v1127, %v1083
        %v1193 = vadd.s32 %v1128, %v1083
        %v1194 = vadd.s32 %v1129, %v1083
        %v1195 = vadd.s32 %v1130, %v1083
        %v1196 = vadd.s32 %v1131, %v1083
        %v1197 = vadd.s32 %v1132, %v1083
        %v1198 = vadd.s32 %v1133, %v1083
        %v1199 = vadd.s32 %v1134, %v1083
        %v1200 = vadd.s32 %v1135, %v1083
        %v1201 = vadd.s32 %v1136, %v1083
        %v1202 = vadd.s32 %v1137, %v1083
        %v1203 = vadd.s32 %v1138, %v1083
        %v1204 = vadd.s32 %v1139, %v1083
        %v1205 = vadd.s32 %v1140, %v1083
        %v1206 = vadd.s32 %v1141, %v1083
        %v1207 = vadd.s32 %v1142, %v1083
        %v1208 = vadd.s32 %v1143, %v1083
        %v1209 = vadd.s32 %v1144, %v1083
        %v1210 = vadd.s32 %v1145, %v1083
        %v1211 = vadd.s32 %v1146, %v1083
        %v1212 = vadd.s32 %v1147, %v1083
        %v1213 = vadd.s32 %v1148, %v1083
        %vm1214 = vcmp.lt.s32.totalorder %v1149, 131584
        %vm1215 = vcmp.lt.s32.totalorder %v1150, 131584
        %vm1216 = vcmp.lt.s32.totalorder %v1151, 131584
        %vm1217 = vcmp.lt.s32.totalorder %v1152, 131584
        %vm1218 = vcmp.lt.s32.totalorder %v1153, 131584
        %vm1219 = vcmp.lt.s32.totalorder %v1154, 131584
        %vm1220 = vcmp.lt.s32.totalorder %v1155, 131584
        %vm1221 = vcmp.lt.s32.totalorder %v1156, 131584
        %vm1222 = vcmp.lt.s32.totalorder %v1157, 131584
        %vm1223 = vcmp.lt.s32.totalorder %v1158, 131584
        %vm1224 = vcmp.lt.s32.totalorder %v1159, 131584
        %vm1225 = vcmp.lt.s32.totalorder %v1160, 131584
        %vm1226 = vcmp.lt.s32.totalorder %v1161, 131584
        %vm1227 = vcmp.lt.s32.totalorder %v1162, 131584
        %vm1228 = vcmp.lt.s32.totalorder %v1163, 131584
        %vm1229 = vcmp.lt.s32.totalorder %v1164, 131584
        %vm1230 = vcmp.lt.s32.totalorder %v1165, 131584
        %vm1231 = vcmp.lt.s32.totalorder %v1166, 131584
        %vm1232 = vcmp.lt.s32.totalorder %v1167, 131584
        %vm1233 = vcmp.lt.s32.totalorder %v1168, 131584
        %vm1234 = vcmp.lt.s32.totalorder %v1169, 131584
        %vm1235 = vcmp.lt.s32.totalorder %v1170, 131584
        %vm1236 = vcmp.lt.s32.totalorder %v1171, 131584
        %vm1237 = vcmp.lt.s32.totalorder %v1172, 131584
        %vm1238 = vcmp.lt.s32.totalorder %v1173, 131584
        %vm1239 = vcmp.lt.s32.totalorder %v1174, 131584
        %vm1240 = vcmp.lt.s32.totalorder %v1175, 131584
        %vm1241 = vcmp.lt.s32.totalorder %v1176, 131584
        %vm1242 = vcmp.lt.s32.totalorder %v1177, 131584
        %vm1243 = vcmp.lt.s32.totalorder %v1178, 131584
        %vm1244 = vcmp.lt.s32.totalorder %v1179, 131584
        %vm1245 = vcmp.lt.s32.totalorder %v1180, 131584
        %vm1246 = vcmp.lt.s32.totalorder %v1181, 131584
        %vm1247 = vcmp.lt.s32.totalorder %v1182, 131584
        %vm1248 = vcmp.lt.s32.totalorder %v1183, 131584
        %vm1249 = vcmp.lt.s32.totalorder %v1184, 131584
        %vm1250 = vcmp.lt.s32.totalorder %v1185, 131584
        %vm1251 = vcmp.lt.s32.totalorder %v1186, 131584
        %vm1252 = vcmp.lt.s32.totalorder %v1187, 131584
        %vm1253 = vcmp.lt.s32.totalorder %v1188, 131584
        %vm1254 = vcmp.lt.s32.totalorder %v1189, 131584
        %vm1255 = vcmp.lt.s32.totalorder %v1190, 131584
        %vm1256 = vcmp.lt.s32.totalorder %v1191, 131584
        %vm1257 = vcmp.lt.s32.totalorder %v1192, 131584
        %vm1258 = vcmp.lt.s32.totalorder %v1193, 131584
        %vm1259 = vcmp.lt.s32.totalorder %v1194, 131584
        %vm1260 = vcmp.lt.s32.totalorder %v1195, 131584
        %vm1261 = vcmp.lt.s32.totalorder %v1196, 131584
        %vm1262 = vcmp.lt.s32.totalorder %v1197, 131584
        %vm1263 = vcmp.lt.s32.totalorder %v1198, 131584
        %vm1264 = vcmp.lt.s32.totalorder %v1199, 131584
        %vm1265 = vcmp.lt.s32.totalorder %v1200, 131584
        %vm1266 = vcmp.lt.s32.totalorder %v1201, 131584
        %vm1267 = vcmp.lt.s32.totalorder %v1202, 131584
        %vm1268 = vcmp.lt.s32.totalorder %v1203, 131584
        %vm1269 = vcmp.lt.s32.totalorder %v1204, 131584
        %vm1270 = vcmp.lt.s32.totalorder %v1205, 131584
        %vm1271 = vcmp.lt.s32.totalorder %v1206, 131584
        %vm1272 = vcmp.lt.s32.totalorder %v1207, 131584
        %vm1273 = vcmp.lt.s32.totalorder %v1208, 131584
        %vm1274 = vcmp.lt.s32.totalorder %v1209, 131584
        %vm1275 = vcmp.lt.s32.totalorder %v1210, 131584
        %vm1276 = vcmp.lt.s32.totalorder %v1211, 131584
        %vm1277 = vcmp.lt.s32.totalorder %v1212, 131584
        %vm1278 = vcmp.lt.s32.totalorder %v1213, 131584
        %v1279 = vsel %vm1214, %v884, 0.0
        %v1280 = vsel %vm1215, %v885, 0.0
        %v1281 = vsel %vm1216, %v886, 0.0
        %v1282 = vsel %vm1217, %v887, 0.0
        %v1283 = vsel %vm1218, %v888, 0.0
        %v1284 = vsel %vm1219, %v889, 0.0
        %v1285 = vsel %vm1220, %v890, 0.0
        %v1286 = vsel %vm1221, %v891, 0.0
        %v1287 = vsel %vm1222, %v892, 0.0
        %v1288 = vsel %vm1223, %v893, 0.0
        %v1289 = vsel %vm1224, %v894, 0.0
        %v1290 = vsel %vm1225, %v895, 0.0
        %v1291 = vsel %vm1226, %v896, 0.0
        %v1292 = vsel %vm1227, %v897, 0.0
        %v1293 = vsel %vm1228, %v898, 0.0
        %v1294 = vsel %vm1229, %v899, 0.0
        %v1295 = vsel %vm1230, %v900, 0.0
        %v1296 = vsel %vm1231, %v901, 0.0
        %v1297 = vsel %vm1232, %v902, 0.0
        %v1298 = vsel %vm1233, %v903, 0.0
        %v1299 = vsel %vm1234, %v904, 0.0
        %v1300 = vsel %vm1235, %v905, 0.0
        %v1301 = vsel %vm1236, %v906, 0.0
        %v1302 = vsel %vm1237, %v907, 0.0
        %v1303 = vsel %vm1238, %v908, 0.0
        %v1304 = vsel %vm1239, %v909, 0.0
        %v1305 = vsel %vm1240, %v910, 0.0
        %v1306 = vsel %vm1241, %v911, 0.0
        %v1307 = vsel %vm1242, %v912, 0.0
        %v1308 = vsel %vm1243, %v913, 0.0
        %v1309 = vsel %vm1244, %v914, 0.0
        %v1310 = vsel %vm1245, %v915, 0.0
        %v1311 = vsel %vm1246, %v916, 0.0
        %v1312 = vsel %vm1247, %v917, 0.0
        %v1313 = vsel %vm1248, %v918, 0.0
        %v1314 = vsel %vm1249, %v919, 0.0
        %v1315 = vsel %vm1250, %v920, 0.0
        %v1316 = vsel %vm1251, %v921, 0.0
        %v1317 = vsel %vm1252, %v922, 0.0
        %v1318 = vsel %vm1253, %v923, 0.0
        %v1319 = vsel %vm1254, %v924, 0.0
        %v1320 = vsel %vm1255, %v925, 0.0
        %v1321 = vsel %vm1256, %v926, 0.0
        %v1322 = vsel %vm1257, %v927, 0.0
        %v1323 = vsel %vm1258, %v928, 0.0
        %v1324 = vsel %vm1259, %v929, 0.0
        %v1325 = vsel %vm1260, %v930, 0.0
        %v1326 = vsel %vm1261, %v931, 0.0
        %v1327 = vsel %vm1262, %v932, 0.0
        %v1328 = vsel %vm1263, %v933, 0.0
        %v1329 = vsel %vm1264, %v934, 0.0
        %v1330 = vsel %vm1265, %v935, 0.0
        %v1331 = vsel %vm1266, %v936, 0.0
        %v1332 = vsel %vm1267, %v937, 0.0
        %v1333 = vsel %vm1268, %v938, 0.0
        %v1334 = vsel %vm1269, %v939, 0.0
        %v1335 = vsel %vm1270, %v940, 0.0
        %v1336 = vsel %vm1271, %v941, 0.0
        %v1337 = vsel %vm1272, %v942, 0.0
        %v1338 = vsel %vm1273, %v943, 0.0
        %v1339 = vsel %vm1274, %v944, 0.0
        %v1340 = vsel %vm1275, %v945, 0.0
        %v1341 = vsel %vm1276, %v946, 0.0
        %v1342 = vsel %vm1277, %v947, 0.0
        %v1343 = vsel %vm1278, %v948, 0.0
        %v1344 = vadd.f32 %v1279, %v1280
        %v1345 = vadd.f32 %v1344, %v1281
        %v1346 = vadd.f32 %v1345, %v1282
        %v1347 = vadd.f32 %v1346, %v1283
        %v1348 = vadd.f32 %v1347, %v1284
        %v1349 = vadd.f32 %v1348, %v1285
        %v1350 = vadd.f32 %v1349, %v1286
        %v1351 = vadd.f32 %v1350, %v1287
        %v1352 = vadd.f32 %v1351, %v1288
        %v1353 = vadd.f32 %v1352, %v1289
        %v1354 = vadd.f32 %v1353, %v1290
        %v1355 = vadd.f32 %v1354, %v1291
        %v1356 = vadd.f32 %v1355, %v1292
        %v1357 = vadd.f32 %v1356, %v1293
        %v1358 = vadd.f32 %v1357, %v1294
        %v1359 = vadd.f32 %v1358, %v1295
        %v1360 = vadd.f32 %v1359, %v1296
        %v1361 = vadd.f32 %v1360, %v1297
        %v1362 = vadd.f32 %v1361, %v1298
        %v1363 = vadd.f32 %v1362, %v1299
        %v1364 = vadd.f32 %v1363, %v1300
        %v1365 = vadd.f32 %v1364, %v1301
        %v1366 = vadd.f32 %v1365, %v1302
        %v1367 = vadd.f32 %v1366, %v1303
        %v1368 = vadd.f32 %v1367, %v1304
        %v1369 = vadd.f32 %v1368, %v1305
        %v1370 = vadd.f32 %v1369, %v1306
        %v1371 = vadd.f32 %v1370, %v1307
        %v1372 = vadd.f32 %v1371, %v1308
        %v1373 = vadd.f32 %v1372, %v1309
        %v1374 = vadd.f32 %v1373, %v1310
        %v1375 = vadd.f32 %v1374, %v1311
        %v1376 = vadd.f32 %v1375, %v1312
        %v1377 = vadd.f32 %v1376, %v1313
        %v1378 = vadd.f32 %v1377, %v1314
        %v1379 = vadd.f32 %v1378, %v1315
        %v1380 = vadd.f32 %v1379, %v1316
        %v1381 = vadd.f32 %v1380, %v1317
        %v1382 = vadd.f32 %v1381, %v1318
        %v1383 = vadd.f32 %v1382, %v1319
        %v1384 = vadd.f32 %v1383, %v1320
        %v1385 = vadd.f32 %v1384, %v1321
        %v1386 = vadd.f32 %v1385, %v1322
        %v1387 = vadd.f32 %v1386, %v1323
        %v1388 = vadd.f32 %v1387, %v1324
        %v1389 = vadd.f32 %v1388, %v1325
        %v1390 = vadd.f32 %v1389, %v1326
        %v1391 = vadd.f32 %v1390, %v1327
        %v1392 = vadd.f32 %v1391, %v1328
        %v1393 = vadd.f32 %v1392, %v1329
        %v1394 = vadd.f32 %v1393, %v1330
        %v1395 = vadd.f32 %v1394, %v1331
        %v1396 = vadd.f32 %v1395, %v1332
        %v1397 = vadd.f32 %v1396, %v1333
        %v1398 = vadd.f32 %v1397, %v1334
        %v1399 = vadd.f32 %v1398, %v1335
        %v1400 = vadd.f32 %v1399, %v1336
        %v1401 = vadd.f32 %v1400, %v1337
        %v1402 = vadd.f32 %v1401, %v1338
        %v1403 = vadd.f32 %v1402, %v1339
        %v1404 = vadd.f32 %v1403, %v1340
        %v1405 = vadd.f32 %v1404, %v1341
        %v1406 = vadd.f32 %v1405, %v1342
        %v1407 = vadd.f32 %v1406, %v1343
        %1408 = vst [vmem:[%s283] sm:$0xff] %v1407
        %s1409 = sand.u32 %s109, 1
        %s1410 = scalar_lea.sflag [#allocation4], %s1409
        %s1411 = sand.u32 %s109, 1
        %s1412 = smul.addr %s1411, 8
        %s1413 = scalar_lea.vmem [#allocation8], %s1412
        // Predicated region
        $region45: #{tpu_custom_call.1} parent=31 // pred_check
          %p1414 = pneg %p119
        $region46: #{tpu_custom_call.1} parent=31 // pred_check_branch
          %1416 = sbr.rel (%p1414) target = $region48
        $region47: #{tpu_custom_call.1} parent=31 // pred_region
          %s1418 = ssub.s32 128, 128
          %1419 = vsyncadd %s1410, %s1418
          %s1420 = smul.addr %s23, 128
          %s1421 = scalar_lea.hbm %s3, %s1420
          %s1423 = sshll.u32 %s1413, 4
          %s1424 = int_to_ptr.vmem [resolvable:$true] %s1423
          %1426 = dma.vmem_to_hbm [thread:$0]  %s1424, 128, %s1421, %s1410
        $region48: #{tpu_custom_call.1} parent=31 // pred_fallthru
          _
      $region32: #{tpu_custom_call.1} parent=5 // pred_fallthru
        _
      %p1427 = scmp.le.s32.totalorder 2, %s18
      // Predicated region
      $region49: #{tpu_custom_call.1} parent=5 // pred_check
        %p1428 = pneg %p1427
      $region50: #{tpu_custom_call.1} parent=5 // pred_check_branch
        %1430 = sbr.rel (%p1428) target = $region52
      $region51: #{tpu_custom_call.1} parent=5 // pred_region
        %s1431 = ssub.s32 %s18, 2
        // Predicated region
        $region53: #{tpu_custom_call.1} parent=51 // pred_check
          %p1432 = pneg %p125
        $region54: #{tpu_custom_call.1} parent=51 // pred_check_branch
          %1434 = sbr.rel (%p1432) target = $region56
        $region55: #{tpu_custom_call.1} parent=51 // pred_region
          %s1435 = sand.u32 %s110, 1
          %s1436 = scalar_lea.sflag [#allocation4], %s1435
          %s1437 = sand.u32 %s110, 1
          %s1438 = smul.addr %s1437, 8
          %s1439 = scalar_lea.vmem [#allocation8], %s1438
          %1440 = dma.done %s1436, 128
        $region56: #{tpu_custom_call.1} parent=51 // pred_fallthru
          _
      $region52: #{tpu_custom_call.1} parent=5 // pred_fallthru
        _
    $region6: #{tpu_custom_call.1} parent=1 // loop_footer
      %s22 = sadd.s32 1, %s18
    $region7: #{tpu_custom_call.1} parent=1 // loop_footer_branch
      %17 = sbr.rel target = $region3
    $region8: #{tpu_custom_call.1} parent=1 // loop_exit
      _
    %1441 = vsyncpa [#allocation3], 1
    %s1442 = scalar_lea.sflag [#allocation3], 1
    %1443 = vsyncpa %s1442, 1
    %1444 = vsyncpa [#allocation6], 1
    %s1445 = scalar_lea.sflag [#allocation6], 1
    %1446 = vsyncpa %s1445, 1
    %1447 = vsyncpa [#allocation4], 1
    %s1448 = scalar_lea.sflag [#allocation4], 1
    %1449 = vsyncpa %s1448, 1

</llo_original>
